<compile_context>
chip_gen: v7x
topology: tpu7x:2x2x1
jax: 0.10.0
libtpu: 0.0.40
codegen_flags: <defaults>
</compile_context>

<pallas_src>
import functools
import math

import jax
import jax.numpy as jnp
import numpy as np
from jax import lax
from jax.experimental import pallas as pl
from jax.experimental.pallas import tpu as pltpu


# --------------------------------------------------------------------------
# Kernel bodies
# --------------------------------------------------------------------------
def _attention_core(q_all, k_all, v_all, masked, wo_ref, out_ref, attn_acc,
                    num_heads):
    """Shared per-grid-step attention core.

    q_all: (Bt*Sq, E) f32, already scaled by 1/sqrt(A) (folded into W_q).
    k_all/v_all: (Bt*Skv, E) f32.
    masked: optional (Bt, Sq, Skv) bool (True = masked with -1e20).
    wo_ref: (E, E) bf16 output-projection weight in x@W layout.
    attn_acc: (Bt*Sq, E) bf16 VMEM scratch (concat-of-heads accumulator).
    """
    Bt, Sq, E = out_ref.shape
    H = num_heads
    A = E // H
    Skv = k_all.shape[0] // Bt
    rows_q = Bt * Sq

    for h in range(H):  # static unroll; each head's tiles feed attn_acc directly
        lo = h * A
        q_h = q_all[:, lo:lo + A].astype(jnp.bfloat16).reshape(Bt, Sq, A)
        k_h = k_all[:, lo:lo + A].astype(jnp.bfloat16).reshape(Bt, Skv, A)
        v_h = v_all[:, lo:lo + A].astype(jnp.bfloat16).reshape(Bt, Skv, A)

        # Batched NT contraction on the MXU; K.T never materialized.
        s = lax.dot_general(q_h, k_h, (((2,), (2,)), ((0,), (0,))),
                            preferred_element_type=jnp.float32)   # (Bt,Sq,Skv)
        if masked is not None:
            s = jnp.where(masked, jnp.float32(-1e20), s)

        # Softmax over keys (f32 math; EUP reciprocal instead of a divide).
        s = s - jnp.max(s, axis=-1, keepdims=True)
        p = jnp.exp(s)
        p = p * pl.reciprocal(jnp.sum(p, axis=-1, keepdims=True), approx=True)

        o_h = lax.dot_general(p.astype(jnp.bfloat16), v_h,
                              (((2,), (1,)), ((0,), (0,))),
                              preferred_element_type=jnp.float32)  # (Bt,Sq,A)

        # Write straight into the preallocated concat buffer (no list/concat).
        attn_acc[:, lo:lo + A] = o_h.reshape(rows_q, A).astype(jnp.bfloat16)

    # Single lane-dense (Bt*Sq, E) x (E, E) output projection.
    out = jnp.dot(attn_acc[...], wo_ref[...],
                  preferred_element_type=jnp.float32)              # (Bt*Sq, E)
    out_ref[...] = out.reshape(Bt, Sq, E).astype(out_ref.dtype)


def mha_self_kernel(x_ref, w_qkv_ref, wo_ref, *rest, num_heads, has_mask):
    """Self-attention path: one fused (Bt*S, E) x (E, 3E) QKV projection."""
    if has_mask:
        mask_ref, out_ref, attn_acc = rest
    else:
        out_ref, attn_acc = rest

    Bt, S, E = x_ref.shape
    rows = Bt * S
    x = x_ref[...].reshape(rows, E).astype(jnp.bfloat16)
    qkv = jnp.dot(x, w_qkv_ref[...], preferred_element_type=jnp.float32)  # (rows, 3E)
    q_all = qkv[:, :E]
    k_all = qkv[:, E:2 * E]
    v_all = qkv[:, 2 * E:]

    masked = (mask_ref[...] != 0) if has_mask else None
    _attention_core(q_all, k_all, v_all, masked, wo_ref, out_ref, attn_acc,
                    num_heads)


def mha_cross_kernel(q_ref, k_ref, v_ref, wq_ref, wk_ref, wv_ref, wo_ref,
                     *rest, num_heads, has_mask):
    """General path (queries/keys/values may differ)."""
    if has_mask:
        mask_ref, out_ref, attn_acc = rest
    else:
        out_ref, attn_acc = rest

    Bt, Sq, E = q_ref.shape
    Skv = k_ref.shape[1]

    q = q_ref[...].reshape(Bt * Sq, E).astype(jnp.bfloat16)
    k = k_ref[...].reshape(Bt * Skv, E).astype(jnp.bfloat16)
    v = v_ref[...].reshape(Bt * Skv, E).astype(jnp.bfloat16)

    q_all = jnp.dot(q, wq_ref[...], preferred_element_type=jnp.float32)
    k_all = jnp.dot(k, wk_ref[...], preferred_element_type=jnp.float32)
    v_all = jnp.dot(v, wv_ref[...], preferred_element_type=jnp.float32)

    masked = (mask_ref[...] != 0) if has_mask else None
    _attention_core(q_all, k_all, v_all, masked, wo_ref, out_ref, attn_acc,
                    num_heads)


# --------------------------------------------------------------------------
# Wrapper
# --------------------------------------------------------------------------
def _choose_batch_tile(B):
    """Largest batch tile that still leaves >= 2 grid steps when B >= 2
    (keeps both v7x TensorCores busy); for B < 2 a single step."""
    if B < 2:
        return max(B, 1)
    for bt in range(B // 2, 0, -1):
        if B % bt == 0:
            return bt
    return 1


def _vmem_limit_bytes():
    """Generation-aware scoped-VMEM limit: ~3/4 of physical, capped at 96 MiB
    (v5e/v6e: 128 MiB physical; v7x: 64 MiB)."""
    try:
        cap = pltpu.get_tpu_info().vmem_capacity_bytes
    except Exception:  # conservative fallback if the query is unavailable
        cap = 64 * 1024 * 1024
    return int(min(96 * 1024 * 1024, cap * 3 // 4))


def multi_head_attention(queries, keys, values, wq, wk, wv, w_out, mask=None):
    """queries: (B,Sq,E), keys/values: (B,Skv,E), all f32.
    wq/wk/wv: (H,A,E) and w_out: (E,E) in the PyTorch nn.Linear
    (out_features, in_features) convention.
    mask: optional boolean (Sq,Skv) or (B,Sq,Skv); True entries -> -1e20."""
    B, Sq, E = queries.shape
    _, Skv, _ = keys.shape
    H, A, _ = wq.shape
    assert H * A == E
    assert keys.shape == values.shape

    # Free layout plumbing in the wrapper:
    #   * stack per-head weights into one (E,E) matrix in x@W layout
    #     (W[:, h*A:(h+1)*A] = wq[h].T) -> lane-dense matmuls, no in-kernel
    #     transposes.
    #   * fold the 1/sqrt(A) softmax scale into W_q (zero kernel cost).
    #   * cast weights to bf16 once (MXU-native input dtype).
    scale = 1.0 / math.sqrt(A)

    def stack_heads(w, s=1.0):                       # (H, A, E) -> (E, E)
        return (jnp.transpose(w, (2, 0, 1)).reshape(E, H * A) * s).astype(
            jnp.bfloat16)

    wq_all = stack_heads(wq, scale)
    wk_all = stack_heads(wk)
    wv_all = stack_heads(wv)
    wo_t = jnp.transpose(w_out, (1, 0)).astype(jnp.bfloat16)  # out = attn @ Wo.T

    fused = (keys is queries) and (values is queries)
    has_mask = mask is not None

    Bt = _choose_batch_tile(B)
    G = B // Bt

    spec_q = pl.BlockSpec((Bt, Sq, E), lambda g: (g, 0, 0))
    spec_kv = pl.BlockSpec((Bt, Skv, E), lambda g: (g, 0, 0))
    # Grid-invariant weight blocks: DMA'd once, resident in VMEM across grid.
    spec_w = pl.BlockSpec((E, E), lambda g: (0, 0))
    spec_w3 = pl.BlockSpec((E, 3 * E), lambda g: (0, 0))

    if fused:
        w_qkv = jnp.concatenate([wq_all, wk_all, wv_all], axis=1)  # (E, 3E)
        inputs = [queries, w_qkv, wo_t]
        in_specs = [spec_q, spec_w3, spec_w]
        kernel = functools.partial(mha_self_kernel, num_heads=H,
                                   has_mask=has_mask)
    else:
        inputs = [queries, keys, values, wq_all, wk_all, wv_all, wo_t]
        in_specs = [spec_q, spec_kv, spec_kv, spec_w, spec_w, spec_w, spec_w]
        kernel = functools.partial(mha_cross_kernel, num_heads=H,
                                   has_mask=has_mask)

    if has_mask:
        # int8 mask: 4x less HBM/VMEM than int32.
        mask_i8 = jnp.broadcast_to(mask, (B, Sq, Skv)).astype(jnp.int8)
        inputs.append(mask_i8)
        in_specs.append(pl.BlockSpec((Bt, Sq, Skv), lambda g: (g, 0, 0)))

    return pl.pallas_call(
        kernel,
        out_shape=jax.ShapeDtypeStruct((B, Sq, E), queries.dtype),
        grid_spec=pltpu.PrefetchScalarGridSpec(
            num_scalar_prefetch=0,
            grid=(G,),
            in_specs=in_specs,
            out_specs=pl.BlockSpec((Bt, Sq, E), lambda g: (g, 0, 0)),
            # bf16 concat-of-heads accumulator; fully rewritten each grid step
            # so it carries no state across "parallel" iterations.
            scratch_shapes=[pltpu.VMEM((Bt * Sq, E), jnp.bfloat16)],
        ),
        compiler_params=pltpu.CompilerParams(
            # Independent output blocks per batch chunk -> shardable across
            # both TensorCores on v7x; harmless on single-TC v5e/v6e.
            dimension_semantics=("parallel",),
            vmem_limit_bytes=_vmem_limit_bytes(),
        ),
    )(*inputs)


# --------------------------------------------------------------------------
# Pure-JAX reference (replicates the PyTorch forward, f32)
# --------------------------------------------------------------------------
def _reference(queries, keys, values, wq, wk, wv, w_out, mask=None):
    H, A, E = wq.shape
    heads = []
    for h in range(H):
        Q = queries @ wq[h].T
        K = keys @ wk[h].T
        V = values @ wv[h].T
        scores = jnp.einsum("bqa,bka->bqk", Q, K) / math.sqrt(A)
        if mask is not None:
            scores = jnp.where(mask, -1e20, scores)
        p = jax.nn.softmax(scores, axis=2)
        heads.append(jnp.einsum("bqk,bka->bqa", p, V))
    attn = jnp.concatenate(heads, axis=-1)
    return attn @ w_out.T


if __name__ == "__main__":
    B, S, E, H = 2, 8, 32, 4
    A = E // H

    key = jax.random.PRNGKey(0)
    kx, kq, kk, kv, kwq, kwk, kwv, kwo = jax.random.split(key, 8)

    x = jax.random.normal(kx, (B, S, E), dtype=jnp.float32)        # self-attn input
    queries = jax.random.normal(kq, (B, S, E), dtype=jnp.float32)  # cross-attn inputs
    keys = jax.random.normal(kk, (B, S, E), dtype=jnp.float32)
    values = jax.random.normal(kv, (B, S, E), dtype=jnp.float32)

    # nn.Linear-style uniform(-1/sqrt(in), 1/sqrt(in)) init.
    bound = 1.0 / math.sqrt(E)
    wq = jax.random.uniform(kwq, (H, A, E), jnp.float32, -bound, bound)
    wk = jax.random.uniform(kwk, (H, A, E), jnp.float32, -bound, bound)
    wv = jax.random.uniform(kwv, (H, A, E), jnp.float32, -bound, bound)
    w_out = jax.random.uniform(kwo, (E, E), jnp.float32, -bound, bound)

    # bf16 MXU inputs + approx EUP reciprocal -> compare against the full-f32
    # reference at a correspondingly looser tolerance.
    tol = dict(rtol=3e-2, atol=3e-2)
    causal = jnp.triu(jnp.ones((S, S), dtype=bool), k=1)
    mask = jnp.broadcast_to(causal, (B, S, S))

    # 1) Self-attention (fused QKV path), no mask.
    out = jax.block_until_ready(
        multi_head_attention(x, x, x, wq, wk, wv, w_out))
    ref = _reference(x, x, x, wq, wk, wv, w_out)
    np.testing.assert_allclose(np.asarray(out), np.asarray(ref), **tol)

    # 2) Self-attention with causal mask (True = masked, masked_fill semantics).
    out_m = jax.block_until_ready(
        multi_head_attention(x, x, x, wq, wk, wv, w_out, mask))
    ref_m = _reference(x, x, x, wq, wk, wv, w_out, mask)
    np.testing.assert_allclose(np.asarray(out_m), np.asarray(ref_m), **tol)

    # 3) Cross-attention (distinct q/k/v), no mask.
    out_c = jax.block_until_ready(
        multi_head_attention(queries, keys, values, wq, wk, wv, w_out))
    ref_c = _reference(queries, keys, values, wq, wk, wv, w_out)
    np.testing.assert_allclose(np.asarray(out_c), np.asarray(ref_c), **tol)

    # 4) Cross-attention with mask.
    out_cm = jax.block_until_ready(
        multi_head_attention(queries, keys, values, wq, wk, wv, w_out, mask))
    ref_cm = _reference(queries, keys, values, wq, wk, wv, w_out, mask)
    np.testing.assert_allclose(np.asarray(out_cm), np.asarray(ref_cm), **tol)

    print("KERNEL_OK")
</pallas_src>

<mosaic_0001>
module attributes {stable_mosaic.version = 11 : i64} {
  func.func @mha_self_kernel(%arg0: i32, %arg1: memref<1x8x32xf32, #tpu.memory_space<vmem>>, %arg2: memref<32x96xbf16, #tpu.memory_space<vmem>>, %arg3: memref<32x32xbf16, #tpu.memory_space<vmem>>, %arg4: memref<1x8x32xf32, #tpu.memory_space<vmem>>, %arg5: memref<8x32xbf16, #tpu.memory_space<vmem>>) attributes {dimension_semantics = [#tpu.dimension_semantics<parallel>], iteration_bounds = array<i64: 2>, scalar_prefetch = 0 : i64, scratch_operands = 1 : i64, tpu.core_type = #tpu.core_type<tc>, window_params = [{transform_indices = @transform_0, window_bounds = array<i64: 1, 8, 32>}, {pipeline_mode = #tpu.pipeline_mode<synchronous>, transform_indices = @transform_1, window_bounds = array<i64: 32, 96>}, {pipeline_mode = #tpu.pipeline_mode<synchronous>, transform_indices = @transform_2, window_bounds = array<i64: 32, 32>}, {transform_indices = @transform_3, window_bounds = array<i64: 1, 8, 32>}]} {
    %c0 = arith.constant 0 : index
    %c0_0 = arith.constant 0 : index
    %c0_1 = arith.constant 0 : index
    %0 = vector.load %arg1[%c0, %c0_0, %c0_1] : memref<1x8x32xf32, #tpu.memory_space<vmem>>, vector<1x8x32xf32>
    %1 = vector.shape_cast %0 : vector<1x8x32xf32> to vector<8x32xf32>
    %2 = arith.truncf %1 : vector<8x32xf32> to vector<8x32xbf16>
    %c0_2 = arith.constant 0 : index
    %c0_3 = arith.constant 0 : index
    %3 = vector.load %arg2[%c0_2, %c0_3] : memref<32x96xbf16, #tpu.memory_space<vmem>>, vector<32x96xbf16>
    %cst = arith.constant dense<0.000000e+00> : vector<8x96xf32>
    %4 = tpu.matmul %2, %3, %cst {dimension_numbers = #tpu.dot_dimension_numbers<[1], [0], [0], [1], [0, 0, 1, 1], [], []>} : vector<8x32xbf16>, vector<32x96xbf16>, vector<8x96xf32> -> vector<8x96xf32>
    %5 = vector.extract_strided_slice %4 {offsets = [0, 0], sizes = [8, 32], strides = [1, 1]} : vector<8x96xf32> to vector<8x32xf32>
    %6 = vector.extract_strided_slice %4 {offsets = [0, 32], sizes = [8, 32], strides = [1, 1]} : vector<8x96xf32> to vector<8x32xf32>
    %7 = vector.extract_strided_slice %4 {offsets = [0, 64], sizes = [8, 32], strides = [1, 1]} : vector<8x96xf32> to vector<8x32xf32>
    %8 = vector.extract_strided_slice %5 {offsets = [0, 0], sizes = [8, 8], strides = [1, 1]} : vector<8x32xf32> to vector<8x8xf32>
    %9 = arith.truncf %8 : vector<8x8xf32> to vector<8x8xbf16>
    %10 = vector.shape_cast %9 : vector<8x8xbf16> to vector<1x8x8xbf16>
    %11 = vector.extract_strided_slice %6 {offsets = [0, 0], sizes = [8, 8], strides = [1, 1]} : vector<8x32xf32> to vector<8x8xf32>
    %12 = arith.truncf %11 : vector<8x8xf32> to vector<8x8xbf16>
    %13 = vector.shape_cast %12 : vector<8x8xbf16> to vector<1x8x8xbf16>
    %14 = vector.extract_strided_slice %7 {offsets = [0, 0], sizes = [8, 8], strides = [1, 1]} : vector<8x32xf32> to vector<8x8xf32>
    %15 = arith.truncf %14 : vector<8x8xf32> to vector<8x8xbf16>
    %16 = vector.shape_cast %15 : vector<8x8xbf16> to vector<1x8x8xbf16>
    %cst_4 = arith.constant dense<0.000000e+00> : vector<1x8x8xf32>
    %17 = tpu.matmul %10, %13, %cst_4 {dimension_numbers = #tpu.dot_dimension_numbers<[2], [2], [1], [1], [0, 0, 0, 1, 1, 1], [0], [0]>} : vector<1x8x8xbf16>, vector<1x8x8xbf16>, vector<1x8x8xf32> -> vector<1x8x8xf32>
    %cst_5 = arith.constant dense<0xFF800000> : vector<1x8xf32>
    %18 = vector.multi_reduction <maximumf>, %17, %cst_5 [2] : vector<1x8x8xf32> to vector<1x8xf32>
    %19 = vector.shape_cast %18 : vector<1x8xf32> to vector<1x8x1xf32>
    %20 = vector.broadcast %19 : vector<1x8x1xf32> to vector<1x8x8xf32>
    %21 = arith.subf %17, %20 : vector<1x8x8xf32>
    %22 = math.exp %21 : vector<1x8x8xf32>
    %cst_6 = arith.constant dense<0.000000e+00> : vector<1x8xf32>
    %23 = vector.multi_reduction <add>, %22, %cst_6 [2] : vector<1x8x8xf32> to vector<1x8xf32>
    %24 = vector.shape_cast %23 : vector<1x8xf32> to vector<1x8x1xf32>
    %25 = tpu.reciprocal %24 {approx = true} : vector<1x8x1xf32> -> vector<1x8x1xf32>
    %26 = vector.broadcast %25 : vector<1x8x1xf32> to vector<1x8x8xf32>
    %27 = arith.mulf %22, %26 : vector<1x8x8xf32>
    %28 = arith.truncf %27 : vector<1x8x8xf32> to vector<1x8x8xbf16>
    %cst_7 = arith.constant dense<0.000000e+00> : vector<1x8x8xf32>
    %29 = tpu.matmul %28, %16, %cst_7 {dimension_numbers = #tpu.dot_dimension_numbers<[2], [1], [1], [2], [0, 0, 0, 1, 1, 2], [0], [0]>} : vector<1x8x8xbf16>, vector<1x8x8xbf16>, vector<1x8x8xf32> -> vector<1x8x8xf32>
    %30 = vector.shape_cast %29 : vector<1x8x8xf32> to vector<8x8xf32>
    %31 = arith.truncf %30 : vector<8x8xf32> to vector<8x8xbf16>
    %c0_8 = arith.constant 0 : index
    %c0_9 = arith.constant 0 : index
    %32 = vector.load %arg5[%c0_8, %c0_9] : memref<8x32xbf16, #tpu.memory_space<vmem>>, vector<8x8xbf16>
    tpu.vector_store %arg5[%c0_8, %c0_9], %31 {strides = array<i32>} : memref<8x32xbf16, #tpu.memory_space<vmem>>, vector<8x8xbf16>,
    %33 = vector.extract_strided_slice %5 {offsets = [0, 8], sizes = [8, 8], strides = [1, 1]} : vector<8x32xf32> to vector<8x8xf32>
    %34 = arith.truncf %33 : vector<8x8xf32> to vector<8x8xbf16>
    %35 = vector.shape_cast %34 : vector<8x8xbf16> to vector<1x8x8xbf16>
    %36 = vector.extract_strided_slice %6 {offsets = [0, 8], sizes = [8, 8], strides = [1, 1]} : vector<8x32xf32> to vector<8x8xf32>
    %37 = arith.truncf %36 : vector<8x8xf32> to vector<8x8xbf16>
    %38 = vector.shape_cast %37 : vector<8x8xbf16> to vector<1x8x8xbf16>
    %39 = vector.extract_strided_slice %7 {offsets = [0, 8], sizes = [8, 8], strides = [1, 1]} : vector<8x32xf32> to vector<8x8xf32>
    %40 = arith.truncf %39 : vector<8x8xf32> to vector<8x8xbf16>
    %41 = vector.shape_cast %40 : vector<8x8xbf16> to vector<1x8x8xbf16>
    %cst_10 = arith.constant dense<0.000000e+00> : vector<1x8x8xf32>
    %42 = tpu.matmul %35, %38, %cst_10 {dimension_numbers = #tpu.dot_dimension_numbers<[2], [2], [1], [1], [0, 0, 0, 1, 1, 1], [0], [0]>} : vector<1x8x8xbf16>, vector<1x8x8xbf16>, vector<1x8x8xf32> -> vector<1x8x8xf32>
    %cst_11 = arith.constant dense<0xFF800000> : vector<1x8xf32>
    %43 = vector.multi_reduction <maximumf>, %42, %cst_11 [2] : vector<1x8x8xf32> to vector<1x8xf32>
    %44 = vector.shape_cast %43 : vector<1x8xf32> to vector<1x8x1xf32>
    %45 = vector.broadcast %44 : vector<1x8x1xf32> to vector<1x8x8xf32>
    %46 = arith.subf %42, %45 : vector<1x8x8xf32>
    %47 = math.exp %46 : vector<1x8x8xf32>
    %cst_12 = arith.constant dense<0.000000e+00> : vector<1x8xf32>
    %48 = vector.multi_reduction <add>, %47, %cst_12 [2] : vector<1x8x8xf32> to vector<1x8xf32>
    %49 = vector.shape_cast %48 : vector<1x8xf32> to vector<1x8x1xf32>
    %50 = tpu.reciprocal %49 {approx = true} : vector<1x8x1xf32> -> vector<1x8x1xf32>
    %51 = vector.broadcast %50 : vector<1x8x1xf32> to vector<1x8x8xf32>
    %52 = arith.mulf %47, %51 : vector<1x8x8xf32>
    %53 = arith.truncf %52 : vector<1x8x8xf32> to vector<1x8x8xbf16>
    %cst_13 = arith.constant dense<0.000000e+00> : vector<1x8x8xf32>
    %54 = tpu.matmul %53, %41, %cst_13 {dimension_numbers = #tpu.dot_dimension_numbers<[2], [1], [1], [2], [0, 0, 0, 1, 1, 2], [0], [0]>} : vector<1x8x8xbf16>, vector<1x8x8xbf16>, vector<1x8x8xf32> -> vector<1x8x8xf32>
    %55 = vector.shape_cast %54 : vector<1x8x8xf32> to vector<8x8xf32>
    %56 = arith.truncf %55 : vector<8x8xf32> to vector<8x8xbf16>
    %c0_14 = arith.constant 0 : index
    %c8 = arith.constant 8 : index
    %57 = vector.load %arg5[%c0_14, %c8] : memref<8x32xbf16, #tpu.memory_space<vmem>>, vector<8x8xbf16>
    tpu.vector_store %arg5[%c0_14, %c8], %56 {strides = array<i32>} : memref<8x32xbf16, #tpu.memory_space<vmem>>, vector<8x8xbf16>,
    %58 = vector.extract_strided_slice %5 {offsets = [0, 16], sizes = [8, 8], strides = [1, 1]} : vector<8x32xf32> to vector<8x8xf32>
    %59 = arith.truncf %58 : vector<8x8xf32> to vector<8x8xbf16>
    %60 = vector.shape_cast %59 : vector<8x8xbf16> to vector<1x8x8xbf16>
    %61 = vector.extract_strided_slice %6 {offsets = [0, 16], sizes = [8, 8], strides = [1, 1]} : vector<8x32xf32> to vector<8x8xf32>
    %62 = arith.truncf %61 : vector<8x8xf32> to vector<8x8xbf16>
    %63 = vector.shape_cast %62 : vector<8x8xbf16> to vector<1x8x8xbf16>
    %64 = vector.extract_strided_slice %7 {offsets = [0, 16], sizes = [8, 8], strides = [1, 1]} : vector<8x32xf32> to vector<8x8xf32>
    %65 = arith.truncf %64 : vector<8x8xf32> to vector<8x8xbf16>
    %66 = vector.shape_cast %65 : vector<8x8xbf16> to vector<1x8x8xbf16>
    %cst_15 = arith.constant dense<0.000000e+00> : vector<1x8x8xf32>
    %67 = tpu.matmul %60, %63, %cst_15 {dimension_numbers = #tpu.dot_dimension_numbers<[2], [2], [1], [1], [0, 0, 0, 1, 1, 1], [0], [0]>} : vector<1x8x8xbf16>, vector<1x8x8xbf16>, vector<1x8x8xf32> -> vector<1x8x8xf32>
    %cst_16 = arith.constant dense<0xFF800000> : vector<1x8xf32>
    %68 = vector.multi_reduction <maximumf>, %67, %cst_16 [2] : vector<1x8x8xf32> to vector<1x8xf32>
    %69 = vector.shape_cast %68 : vector<1x8xf32> to vector<1x8x1xf32>
    %70 = vector.broadcast %69 : vector<1x8x1xf32> to vector<1x8x8xf32>
    %71 = arith.subf %67, %70 : vector<1x8x8xf32>
    %72 = math.exp %71 : vector<1x8x8xf32>
    %cst_17 = arith.constant dense<0.000000e+00> : vector<1x8xf32>
    %73 = vector.multi_reduction <add>, %72, %cst_17 [2] : vector<1x8x8xf32> to vector<1x8xf32>
    %74 = vector.shape_cast %73 : vector<1x8xf32> to vector<1x8x1xf32>
    %75 = tpu.reciprocal %74 {approx = true} : vector<1x8x1xf32> -> vector<1x8x1xf32>
    %76 = vector.broadcast %75 : vector<1x8x1xf32> to vector<1x8x8xf32>
    %77 = arith.mulf %72, %76 : vector<1x8x8xf32>
    %78 = arith.truncf %77 : vector<1x8x8xf32> to vector<1x8x8xbf16>
    %cst_18 = arith.constant dense<0.000000e+00> : vector<1x8x8xf32>
    %79 = tpu.matmul %78, %66, %cst_18 {dimension_numbers = #tpu.dot_dimension_numbers<[2], [1], [1], [2], [0, 0, 0, 1, 1, 2], [0], [0]>} : vector<1x8x8xbf16>, vector<1x8x8xbf16>, vector<1x8x8xf32> -> vector<1x8x8xf32>
    %80 = vector.shape_cast %79 : vector<1x8x8xf32> to vector<8x8xf32>
    %81 = arith.truncf %80 : vector<8x8xf32> to vector<8x8xbf16>
    %c0_19 = arith.constant 0 : index
    %c16 = arith.constant 16 : index
    %82 = vector.load %arg5[%c0_19, %c16] : memref<8x32xbf16, #tpu.memory_space<vmem>>, vector<8x8xbf16>
    tpu.vector_store %arg5[%c0_19, %c16], %81 {strides = array<i32>} : memref<8x32xbf16, #tpu.memory_space<vmem>>, vector<8x8xbf16>,
    %83 = vector.extract_strided_slice %5 {offsets = [0, 24], sizes = [8, 8], strides = [1, 1]} : vector<8x32xf32> to vector<8x8xf32>
    %84 = arith.truncf %83 : vector<8x8xf32> to vector<8x8xbf16>
    %85 = vector.shape_cast %84 : vector<8x8xbf16> to vector<1x8x8xbf16>
    %86 = vector.extract_strided_slice %6 {offsets = [0, 24], sizes = [8, 8], strides = [1, 1]} : vector<8x32xf32> to vector<8x8xf32>
    %87 = arith.truncf %86 : vector<8x8xf32> to vector<8x8xbf16>
    %88 = vector.shape_cast %87 : vector<8x8xbf16> to vector<1x8x8xbf16>
    %89 = vector.extract_strided_slice %7 {offsets = [0, 24], sizes = [8, 8], strides = [1, 1]} : vector<8x32xf32> to vector<8x8xf32>
    %90 = arith.truncf %89 : vector<8x8xf32> to vector<8x8xbf16>
    %91 = vector.shape_cast %90 : vector<8x8xbf16> to vector<1x8x8xbf16>
    %cst_20 = arith.constant dense<0.000000e+00> : vector<1x8x8xf32>
    %92 = tpu.matmul %85, %88, %cst_20 {dimension_numbers = #tpu.dot_dimension_numbers<[2], [2], [1], [1], [0, 0, 0, 1, 1, 1], [0], [0]>} : vector<1x8x8xbf16>, vector<1x8x8xbf16>, vector<1x8x8xf32> -> vector<1x8x8xf32>
    %cst_21 = arith.constant dense<0xFF800000> : vector<1x8xf32>
    %93 = vector.multi_reduction <maximumf>, %92, %cst_21 [2] : vector<1x8x8xf32> to vector<1x8xf32>
    %94 = vector.shape_cast %93 : vector<1x8xf32> to vector<1x8x1xf32>
    %95 = vector.broadcast %94 : vector<1x8x1xf32> to vector<1x8x8xf32>
    %96 = arith.subf %92, %95 : vector<1x8x8xf32>
    %97 = math.exp %96 : vector<1x8x8xf32>
    %cst_22 = arith.constant dense<0.000000e+00> : vector<1x8xf32>
    %98 = vector.multi_reduction <add>, %97, %cst_22 [2] : vector<1x8x8xf32> to vector<1x8xf32>
    %99 = vector.shape_cast %98 : vector<1x8xf32> to vector<1x8x1xf32>
    %100 = tpu.reciprocal %99 {approx = true} : vector<1x8x1xf32> -> vector<1x8x1xf32>
    %101 = vector.broadcast %100 : vector<1x8x1xf32> to vector<1x8x8xf32>
    %102 = arith.mulf %97, %101 : vector<1x8x8xf32>
    %103 = arith.truncf %102 : vector<1x8x8xf32> to vector<1x8x8xbf16>
    %cst_23 = arith.constant dense<0.000000e+00> : vector<1x8x8xf32>
    %104 = tpu.matmul %103, %91, %cst_23 {dimension_numbers = #tpu.dot_dimension_numbers<[2], [1], [1], [2], [0, 0, 0, 1, 1, 2], [0], [0]>} : vector<1x8x8xbf16>, vector<1x8x8xbf16>, vector<1x8x8xf32> -> vector<1x8x8xf32>
    %105 = vector.shape_cast %104 : vector<1x8x8xf32> to vector<8x8xf32>
    %106 = arith.truncf %105 : vector<8x8xf32> to vector<8x8xbf16>
    %c0_24 = arith.constant 0 : index
    %c24 = arith.constant 24 : index
    %107 = vector.load %arg5[%c0_24, %c24] : memref<8x32xbf16, #tpu.memory_space<vmem>>, vector<8x8xbf16>
    tpu.vector_store %arg5[%c0_24, %c24], %106 {strides = array<i32>} : memref<8x32xbf16, #tpu.memory_space<vmem>>, vector<8x8xbf16>,
    %c0_25 = arith.constant 0 : index
    %c0_26 = arith.constant 0 : index
    %108 = vector.load %arg5[%c0_25, %c0_26] : memref<8x32xbf16, #tpu.memory_space<vmem>>, vector<8x32xbf16>
    %c0_27 = arith.constant 0 : index
    %c0_28 = arith.constant 0 : index
    %109 = vector.load %arg3[%c0_27, %c0_28] : memref<32x32xbf16, #tpu.memory_space<vmem>>, vector<32x32xbf16>
    %cst_29 = arith.constant dense<0.000000e+00> : vector<8x32xf32>
    %110 = tpu.matmul %108, %109, %cst_29 {dimension_numbers = #tpu.dot_dimension_numbers<[1], [0], [0], [1], [0, 0, 1, 1], [], []>} : vector<8x32xbf16>, vector<32x32xbf16>, vector<8x32xf32> -> vector<8x32xf32>
    %111 = vector.shape_cast %110 : vector<8x32xf32> to vector<1x8x32xf32>
    %c0_30 = arith.constant 0 : index
    %c0_31 = arith.constant 0 : index
    %c0_32 = arith.constant 0 : index
    %112 = vector.load %arg4[%c0_30, %c0_31, %c0_32] : memref<1x8x32xf32, #tpu.memory_space<vmem>>, vector<1x8x32xf32>
    tpu.vector_store %arg4[%c0_30, %c0_31, %c0_32], %111 {strides = array<i32>} : memref<1x8x32xf32, #tpu.memory_space<vmem>>, vector<1x8x32xf32>,
    return
  }
  func.func @transform_0(%arg0: i32) -> (i32, i32, i32) {
    %c0_i32 = arith.constant 0 : i32
    %c0_i32_0 = arith.constant 0 : i32
    %c0_i32_1 = arith.constant 0 : i32
    return %arg0, %c0_i32, %c0_i32_0 : i32, i32, i32
  }
  func.func @transform_1(%arg0: i32) -> (i32, i32) {
    %c0_i32 = arith.constant 0 : i32
    %c0_i32_0 = arith.constant 0 : i32
    %c0_i32_1 = arith.constant 0 : i32
    return %c0_i32, %c0_i32_0 : i32, i32
  }
  func.func @transform_2(%arg0: i32) -> (i32, i32) {
    %c0_i32 = arith.constant 0 : i32
    %c0_i32_0 = arith.constant 0 : i32
    %c0_i32_1 = arith.constant 0 : i32
    return %c0_i32, %c0_i32_0 : i32, i32
  }
  func.func @transform_3(%arg0: i32) -> (i32, i32, i32) {
    %c0_i32 = arith.constant 0 : i32
    %c0_i32_0 = arith.constant 0 : i32
    %c0_i32_1 = arith.constant 0 : i32
    return %arg0, %c0_i32, %c0_i32_0 : i32, i32, i32
  }
}

</mosaic_0001>

<llo_original>
// kernel: tpu_custom_call.1
$region0: #{tpu_custom_call.1}
  #allocation0 [shape = 'u32[]', space=smem, size = 0x4, offset = 0x4, fixed_abs, tag = 'smem constant byte address 0x4 - core index']
  #allocation1 [shape = 'u32[144,128]{1,0:T(1,128)}', space=vmem, size = 0x12000, scoped, tag = 'internal scratch']
  #allocation2 [shape = 'bf16[8,32]{1,0:T(8,128)(2,1)}', space=vmem, size = 0x800, scoped, tag = 'scratch operand']
  %s0 = inlined_call_operand.hbm [shape: f32[2,8,32], index: 0, kind: input, shape index: {}]
  %s1 = inlined_call_operand.hbm [shape: bf16[32,96], index: 1, kind: input, shape index: {}]
  %s2 = inlined_call_operand.hbm [shape: bf16[32,32], index: 2, kind: input, shape index: {}]
  %s3 = inlined_call_operand.hbm [shape: f32[2,8,32], index: 3, kind: output, shape index: {}]
  %s4 = sld [smem:[#allocation0]]
  $region57: #{tpu_custom_call.1} parent=0
    _
  %s6 = ssub.s32 1, %s4
  %s7 = scalar_select 0, %s6, %s4
  $region1: #{tpu_custom_call.1} parent=0
    #allocation3 [shape = 'u8[8192]{0}', space=vmem, size = 0x2000, scoped, tag = 'input window, operand 0']
    #allocation4 [shape = 's32[2]{0}', space=sflag, size = 0x8, scoped, tag = 'scoped memory for tpu_custom_call.1']
    #allocation5 [shape = 's32[2]{0}', space=sflag, size = 0x8, scoped, tag = 'scoped memory for tpu_custom_call.1']
    #allocation6 [shape = 'u8[8192]{0}', space=vmem, size = 0x2000, scoped, tag = 'input window, operand 1, single buffered']
    #allocation7 [shape = 's32[1]{0}', space=sflag, size = 0x4, scoped, tag = 'scoped memory for tpu_custom_call.1']
    #allocation8 [shape = 'u8[8192]{0}', space=vmem, size = 0x2000, scoped, tag = 'input window, operand 2, single buffered']
    #allocation9 [shape = 'u8[8192]{0}', space=vmem, size = 0x2000, scoped, tag = 'output window, operand 0']
    %8 = vsyncpa [#allocation4], 0
    %s9 = scalar_lea.sflag [#allocation4], 1
    %10 = vsyncpa %s9, 0
    %11 = vsyncpa [#allocation7], 0
    %12 = vsyncpa [#allocation5], 0
    %s13 = scalar_lea.sflag [#allocation5], 1
    %14 = vsyncpa %s13, 0
    loop: start=0, step=1, limit=4
    $region2: #{tpu_custom_call.1} parent=1 // loop_pre_header
      _
    $region3: #{tpu_custom_call.1} parent=1 // loop_header
      %s16 = sphi 0, %s20
      %p17 = scmp.ge.s32.totalorder %s16, 4
      %s26 = sphi 0, %s28
      %s29 = sphi 0, %s26
      %s30 = sphi 0, %s29
      %s46 = sphi 0, %s30
      %s50 = sphi 0, %s50
      %s52 = sphi 0, %s50
      %s53 = sphi 0, %s52
      %s67 = sphi 0, %s53
      %s71 = sphi 0, %s71
      %s73 = sphi 0, %s71
      %s74 = sphi 0, %s73
      %s88 = sphi 0, %s74
      %s94 = sphi 0, %s96
      %s97 = sphi 0, %s94
      %s98 = sphi 0, %s97
      %s114 = sphi 0, %s98
    $region4: #{tpu_custom_call.1} parent=1 // loop_header_branch
      %19 = sbr.rel (%p17) target = $region8
    $region5: #{tpu_custom_call.1} parent=1 // loop_body
      %s21 = ssub.s32 %s16, 1
      %s22 = ssub.s32 %s16, 2
      %s23 = sadd.s32 %s16, 1
      %s24 = ssub.s32 %s16, %s23
      %p25 = scmp.eq.s32.totalorder %s24, 0
      %s27 = sadd.s32 %s26, 1
      %s28 = scalar_select %p25, %s26, %s27
      %p31 = pneg %p25
      %p32 = scmp.eq.s32.totalorder %s16, 1
      %p33 = por %p31, %p32
      %p34 = scmp.ne.s32.totalorder %s26, %s29
      %p35 = scmp.eq.s32.totalorder %s16, 0
      %p36 = por %p34, %p35
      %p37 = scmp.ne.s32.totalorder %s26, %s29
      %p38 = scmp.eq.s32.totalorder %s21, 1
      %p39 = por %p37, %p38
      %p40 = scmp.ne.s32.totalorder %s29, %s30
      %p41 = scmp.eq.s32.totalorder %s21, 0
      %p42 = por %p40, %p41
      %p43 = scmp.ne.s32.totalorder %s29, %s30
      %p44 = scmp.eq.s32.totalorder %s22, 1
      %p45 = por %p43, %p44
      %p47 = scmp.ne.s32.totalorder %s30, %s46
      %p48 = scmp.eq.s32.totalorder %s22, 0
      %p49 = por %p47, %p48
      %s51 = sadd.s32 %s50, 1
      %p54 = scmp.eq.s32.totalorder %s16, 1
      %p55 = scmp.ne.s32.totalorder %s50, %s52
      %p56 = scmp.eq.s32.totalorder %s16, 0
      %p57 = por %p55, %p56
      %p58 = scmp.ne.s32.totalorder %s50, %s52
      %p59 = scmp.eq.s32.totalorder %s21, 1
      %p60 = por %p58, %p59
      %p61 = scmp.ne.s32.totalorder %s52, %s53
      %p62 = scmp.eq.s32.totalorder %s21, 0
      %p63 = por %p61, %p62
      %p64 = scmp.ne.s32.totalorder %s52, %s53
      %p65 = scmp.eq.s32.totalorder %s22, 1
      %p66 = por %p64, %p65
      %p68 = scmp.ne.s32.totalorder %s53, %s67
      %p69 = scmp.eq.s32.totalorder %s22, 0
      %p70 = por %p68, %p69
      %s72 = sadd.s32 %s71, 1
      %p75 = scmp.eq.s32.totalorder %s16, 1
      %p76 = scmp.ne.s32.totalorder %s71, %s73
      %p77 = scmp.eq.s32.totalorder %s16, 0
      %p78 = por %p76, %p77
      %p79 = scmp.ne.s32.totalorder %s71, %s73
      %p80 = scmp.eq.s32.totalorder %s21, 1
      %p81 = por %p79, %p80
      %p82 = scmp.ne.s32.totalorder %s73, %s74
      %p83 = scmp.eq.s32.totalorder %s21, 0
      %p84 = por %p82, %p83
      %p85 = scmp.ne.s32.totalorder %s73, %s74
      %p86 = scmp.eq.s32.totalorder %s22, 1
      %p87 = por %p85, %p86
      %p89 = scmp.ne.s32.totalorder %s74, %s88
      %p90 = scmp.eq.s32.totalorder %s22, 0
      %p91 = por %p89, %p90
      %s92 = ssub.s32 %s16, %s23
      %p93 = scmp.eq.s32.totalorder %s92, 0
      %s95 = sadd.s32 %s94, 1
      %s96 = scalar_select %p93, %s94, %s95
      %p99 = pneg %p93
      %p100 = scmp.eq.s32.totalorder %s16, 1
      %p101 = por %p99, %p100
      %p102 = scmp.ne.s32.totalorder %s94, %s97
      %p103 = scmp.eq.s32.totalorder %s16, 0
      %p104 = por %p102, %p103
      %p105 = scmp.ne.s32.totalorder %s94, %s97
      %p106 = scmp.eq.s32.totalorder %s21, 1
      %p107 = por %p105, %p106
      %p108 = scmp.ne.s32.totalorder %s97, %s98
      %p109 = scmp.eq.s32.totalorder %s21, 0
      %p110 = por %p108, %p109
      %p111 = scmp.ne.s32.totalorder %s97, %s98
      %p112 = scmp.eq.s32.totalorder %s22, 1
      %p113 = por %p111, %p112
      %p115 = scmp.ne.s32.totalorder %s98, %s114
      %p116 = scmp.eq.s32.totalorder %s22, 0
      %p117 = por %p115, %p116
      %p118 = scmp.le.s32.totalorder 1, %s16
      %p119 = scmp.lt.s32.totalorder %s16, 3
      %p120 = pnand %p118, %p119
      %p121 = pneg %p120
      // Predicated region
      $region9: #{tpu_custom_call.1} parent=5 // pred_check
        _
      $region10: #{tpu_custom_call.1} parent=5 // pred_check_branch
        %123 = sbr.rel (%p120) target = $region12
      $region11: #{tpu_custom_call.1} parent=5 // pred_region
        %s124 = ssub.s32 %s16, 1
        // Predicated region
        $region13: #{tpu_custom_call.1} parent=11 // pred_check
          %p125 = pneg %p63
        $region14: #{tpu_custom_call.1} parent=11 // pred_check_branch
          %127 = sbr.rel (%p125) target = $region16
        $region15: #{tpu_custom_call.1} parent=11 // pred_region
          %s129 = ssub.s32 256, 256
          %130 = vsyncadd [#allocation7], %s129
          %s131 = sshll.u32 [#allocation6], 4
          %s132 = int_to_ptr.vmem [resolvable:$true] %s131
          %137 = dma.hbm_to_vmem [thread:$0]  %s1, 256, %s132, [#allocation7], 64, 64, 4
        $region16: #{tpu_custom_call.1} parent=11 // pred_fallthru
          _
        // Predicated region
        $region17: #{tpu_custom_call.1} parent=11 // pred_check
          %p138 = pneg %p84
        $region18: #{tpu_custom_call.1} parent=11 // pred_check_branch
          %140 = sbr.rel (%p138) target = $region20
        $region19: #{tpu_custom_call.1} parent=11 // pred_region
          %s142 = ssub.s32 256, 256
          %143 = vsyncadd [#allocation7], %s142
          %s144 = sshll.u32 [#allocation8], 4
          %s145 = int_to_ptr.vmem [resolvable:$true] %s144
          %150 = dma.hbm_to_vmem [thread:$0]  %s2, 256, %s145, [#allocation7], 64, 64, 4
        $region20: #{tpu_custom_call.1} parent=11 // pred_fallthru
          _
      $region12: #{tpu_custom_call.1} parent=5 // pred_fallthru
        _
      %p151 = scmp.lt.s32.totalorder %s16, 2
      // Predicated region
      $region21: #{tpu_custom_call.1} parent=5 // pred_check
        %p152 = pneg %p151
      $region22: #{tpu_custom_call.1} parent=5 // pred_check_branch
        %154 = sbr.rel (%p152) target = $region24
      $region23: #{tpu_custom_call.1} parent=5 // pred_region
        // Predicated region
        $region25: #{tpu_custom_call.1} parent=23 // pred_check
          %p155 = pneg %p36
        $region26: #{tpu_custom_call.1} parent=23 // pred_check_branch
          %157 = sbr.rel (%p155) target = $region28
        $region27: #{tpu_custom_call.1} parent=23 // pred_region
          %s158 = sand.u32 %s26, 1
          %s159 = scalar_lea.sflag [#allocation4], %s158
          %s160 = sand.u32 %s26, 1
          %s161 = smul.addr %s160, 8
          %s162 = scalar_lea.vmem [#allocation3], %s161
          %s164 = ssub.s32 128, 128
          %165 = vsyncadd %s159, %s164
          %s166 = smul.addr %s16, 128
          %s167 = scalar_lea.hbm %s0, %s166
          %s169 = sshll.u32 %s162, 4
          %s170 = int_to_ptr.vmem [resolvable:$true] %s169
          %172 = dma.hbm_to_vmem [thread:$0]  %s167, 128, %s170, %s159
        $region28: #{tpu_custom_call.1} parent=23 // pred_fallthru
          _
      $region24: #{tpu_custom_call.1} parent=5 // pred_fallthru
        _
      %p173 = scmp.le.s32.totalorder 1, %s16
      %p174 = scmp.lt.s32.totalorder %s16, 3
      %p175 = pnand %p173, %p174
      %p176 = pneg %p175
      // Predicated region
      $region29: #{tpu_custom_call.1} parent=5 // pred_check
        _
      $region30: #{tpu_custom_call.1} parent=5 // pred_check_branch
        %178 = sbr.rel (%p175) target = $region32
      $region31: #{tpu_custom_call.1} parent=5 // pred_region
        %s179 = ssub.s32 %s16, 1
        %s180 = sand.u32 %s29, 1
        %s181 = scalar_lea.sflag [#allocation4], %s180
        %s182 = sand.u32 %s29, 1
        %s183 = smul.addr %s182, 8
        %s184 = scalar_lea.vmem [#allocation3], %s183
        // Predicated region
        $region33: #{tpu_custom_call.1} parent=31 // pred_check
          %p185 = pneg %p42
        $region34: #{tpu_custom_call.1} parent=31 // pred_check_branch
          %187 = sbr.rel (%p185) target = $region36
        $region35: #{tpu_custom_call.1} parent=31 // pred_region
          %188 = dma.done %s181, 128
        $region36: #{tpu_custom_call.1} parent=31 // pred_fallthru
          _
        // Predicated region
        $region37: #{tpu_custom_call.1} parent=31 // pred_check
          %p189 = pneg %p63
        $region38: #{tpu_custom_call.1} parent=31 // pred_check_branch
          %191 = sbr.rel (%p189) target = $region40
        $region39: #{tpu_custom_call.1} parent=31 // pred_region
          %192 = dma.done [#allocation7], 256
        $region40: #{tpu_custom_call.1} parent=31 // pred_fallthru
          _
        // Predicated region
        $region41: #{tpu_custom_call.1} parent=31 // pred_check
          %p193 = pneg %p84
        $region42: #{tpu_custom_call.1} parent=31 // pred_check_branch
          %195 = sbr.rel (%p193) target = $region44
        $region43: #{tpu_custom_call.1} parent=31 // pred_region
          %196 = dma.done [#allocation7], 256
        $region44: #{tpu_custom_call.1} parent=31 // pred_fallthru
          _
        %s197 = sand.u32 %s29, 1
        %s198 = scalar_lea.sflag [#allocation4], %s197
        %s199 = sand.u32 %s29, 1
        %s200 = smul.addr %s199, 8
        %s201 = scalar_lea.vmem [#allocation3], %s200
        %p202 = pneg %p42
        %p203 = pneg %p39
        %p204 = pneg %p63
        %p205 = pneg %p60
        %p206 = pneg %p84
        %p207 = pneg %p81
        %p208 = pneg %p110
        %p209 = pneg %p107
        %s210 = sand.u32 %s97, 1
        %s211 = scalar_lea.sflag [#allocation5], %s210
        %s212 = sand.u32 %s97, 1
        %s213 = smul.addr %s212, 8
        %s214 = scalar_lea.vmem [#allocation9], %s213
        %v216 = vld [vmem:[%s184] sm:$0xff]
        %v217 = vpack.c.bf16 %v216, %v216
        %v218 = vld [vmem:[#allocation6] sm:$0xf]
        %v219 = vld [vmem:[#allocation6 + $0x4] sm:$0xf]
        %v220 = vld [vmem:[#allocation6 + $0x8] sm:$0xf]
        %v221 = vld [vmem:[#allocation6 + $0xc] sm:$0xf]
        %v226 = vunpack.c.l.b16 %v218
        %v227 = vunpack.c.l.b16 %v219
        %v228 = vunpack.c.l.b16 %v220
        %v229 = vunpack.c.l.b16 %v221
        %v230 = vpack.c.b16 %v227, %v226
        %v231 = vpack.c.b16 %v229, %v228
        %vm234 = vcmask 261120
        %v236 = vsel %vm234, %v217, 0
        %238 = vmatprep.subr.bf16.mxu0 0
        %239 = vmatpush1.bf16.msra.mxu0 %v230
        %240 = vmatprep.subr.bf16.mxu0 0
        %241 = vmatpush1.bf16.msra.mxu0 %v231
        %242 = vmatprep.subr.bf16.mxu0 0
        %243 = vmatpush1.bf16.msra.mxu0 0
        %244 = vmatprep.subr.bf16.mxu0 0
        %245 = vmatpush1.bf16.msra.mxu0 0
        %246 = vmatprep.subr.bf16.mxu0 0
        %247 = vmatpush1.bf16.msra.mxu0 0
        %248 = vmatprep.subr.bf16.mxu0 0
        %249 = vmatpush1.bf16.msra.mxu0 0
        %250 = vmatprep.subr.bf16.mxu0 0
        %251 = vmatpush1.bf16.msra.mxu0 0
        %252 = vmatprep.subr.bf16.mxu0 0
        %253 = vmatpush1.bf16.msra.mxu0 0
        %254 = vmatprep.subr.bf16.mxu0 0
        %255 = vmatpush1.bf16.msra.mxu0 0
        %256 = vmatprep.subr.bf16.mxu0 0
        %257 = vmatpush1.bf16.msra.mxu0 0
        %258 = vmatprep.subr.bf16.mxu0 0
        %259 = vmatpush1.bf16.msra.mxu0 0
        %260 = vmatprep.subr.bf16.mxu0 0
        %261 = vmatpush1.bf16.msra.mxu0 0
        %262 = vmatprep.subr.bf16.mxu0 0
        %263 = vmatpush1.bf16.msra.mxu0 0
        %264 = vmatprep.subr.bf16.mxu0 0
        %265 = vmatpush1.bf16.msra.mxu0 0
        %266 = vmatprep.subr.bf16.mxu0 0
        %267 = vmatpush1.bf16.msra.mxu0 0
        %268 = vmatprep.subr.bf16.mxu0 0
        %269 = vmatpush1.bf16.msra.mxu0 0
        %270 = vmatprep.mubr.bf16.mxu0 0
        %271 = vmatmul.mubr.bf16.gmra.mrb[0].mxu0 %v236
        %v272 = vpop.f32.mrb[0].mxu0
        %v273 = vadd.f32 0.0, %v272
        %v274 = vpop.f32.mrb[0].mxu0
        %v275 = vpop.f32.mrb[0].mxu0
        %v276 = vpop.f32.mrb[0].mxu0
        %277 = vdwg.mxu0
        %v278 = vpack.c.bf16 %v273, %v273
        %280 = vrot.lane.b32.xlu0 %v278, 96
        %v281 = vpop.permute.xlu0 %280
        %vm282 = vcmask 64512
        %v284 = vsel %vm282, %v278, 0
        %v287 = vsel %vm282, %v281, 0
        %289 = vmatprep.subr.bf16.mxu0 0
        %290 = vmatpush1.bf16.xpose.msra.mxu0 %v287
        %291 = vmatprep.subr.bf16.mxu0 0
        %292 = vmatpush1.bf16.xpose.msra.mxu0 0
        %293 = vmatprep.subr.bf16.mxu0 0
        %294 = vmatpush1.bf16.xpose.msra.mxu0 0
        %295 = vmatprep.subr.bf16.mxu0 0
        %296 = vmatpush1.bf16.xpose.msra.mxu0 0
        %297 = vmatprep.subr.bf16.mxu0 0
        %298 = vmatpush1.bf16.xpose.msra.mxu0 0
        %299 = vmatprep.subr.bf16.mxu0 0
        %300 = vmatpush1.bf16.xpose.msra.mxu0 0
        %301 = vmatprep.subr.bf16.mxu0 0
        %302 = vmatpush1.bf16.xpose.msra.mxu0 0
        %303 = vmatprep.subr.bf16.mxu0 0
        %304 = vmatpush1.bf16.xpose.msra.mxu0 0
        %305 = vmatprep.subr.bf16.mxu0 0
        %306 = vmatpush1.bf16.xpose.msra.mxu0 0
        %307 = vmatprep.subr.bf16.mxu0 0
        %308 = vmatpush1.bf16.xpose.msra.mxu0 0
        %309 = vmatprep.subr.bf16.mxu0 0
        %310 = vmatpush1.bf16.xpose.msra.mxu0 0
        %311 = vmatprep.subr.bf16.mxu0 0
        %312 = vmatpush1.bf16.xpose.msra.mxu0 0
        %313 = vmatprep.subr.bf16.mxu0 0
        %314 = vmatpush1.bf16.xpose.msra.mxu0 0
        %315 = vmatprep.subr.bf16.mxu0 0
        %316 = vmatpush1.bf16.xpose.msra.mxu0 0
        %317 = vmatprep.subr.bf16.mxu0 0
        %318 = vmatpush1.bf16.xpose.msra.mxu0 0
        %319 = vmatprep.subr.bf16.mxu0 0
        %320 = vmatpush1.bf16.xpose.msra.mxu0 0
        %321 = vmatprep.mubr.bf16.mxu0 0
        %322 = vmatmul.mubr.bf16.gmra.mrb[0].mxu0 %v284
        %v323 = vpop.f32.mrb[0].mxu0
        %v324 = vadd.f32 0.0, %v323
        %v325 = vpop.f32.mrb[0].mxu0
        %v326 = vpop.f32.mrb[0].mxu0
        %v327 = vpop.f32.mrb[0].mxu0
        %328 = vdwg.mxu0
        %v329 = vsel %vm282, %v324, -inf
        %330 = vmax.xlane.f32.xlu0 %v329
        %v331 = vpop.xlane.xlu0 %330
        %v332 = vsub.f32 %v324, %v331
        %v333 = vmul.f32 %v332, 1.442695
        %v334 = vpow.pop %v333
        %v335 = vsel %vm282, %v334, 0.0
        %336 = vadd.xlane.f32.xlu0 %v335
        %v337 = vpop.xlane.xlu0 %336
        %v338 = vrcp.pop %v337
        %v339 = vmul.f32 %v334, %v338
        %v340 = vpack.c.bf16 %v339, %v339
        %341 = vrot.lane.b32.xlu0 %v278, 64
        %v342 = vpop.permute.xlu0 %341
        %v344 = vsel %vm282, %v340, 0
        %vm346 = vcmask 1043456
        %v348 = vsel %vm346, %v342, 0
        %350 = vmatprep.subr.bf16.mxu0 0
        %351 = vmatpush1.bf16.msra.mxu0 %v348
        %352 = vmatprep.subr.bf16.mxu0 0
        %353 = vmatpush1.bf16.msra.mxu0 0
        %354 = vmatprep.subr.bf16.mxu0 0
        %355 = vmatpush1.bf16.msra.mxu0 0
        %356 = vmatprep.subr.bf16.mxu0 0
        %357 = vmatpush1.bf16.msra.mxu0 0
        %358 = vmatprep.subr.bf16.mxu0 0
        %359 = vmatpush1.bf16.msra.mxu0 0
        %360 = vmatprep.subr.bf16.mxu0 0
        %361 = vmatpush1.bf16.msra.mxu0 0
        %362 = vmatprep.subr.bf16.mxu0 0
        %363 = vmatpush1.bf16.msra.mxu0 0
        %364 = vmatprep.subr.bf16.mxu0 0
        %365 = vmatpush1.bf16.msra.mxu0 0
        %366 = vmatprep.subr.bf16.mxu0 0
        %367 = vmatpush1.bf16.msra.mxu0 0
        %368 = vmatprep.subr.bf16.mxu0 0
        %369 = vmatpush1.bf16.msra.mxu0 0
        %370 = vmatprep.subr.bf16.mxu0 0
        %371 = vmatpush1.bf16.msra.mxu0 0
        %372 = vmatprep.subr.bf16.mxu0 0
        %373 = vmatpush1.bf16.msra.mxu0 0
        %374 = vmatprep.subr.bf16.mxu0 0
        %375 = vmatpush1.bf16.msra.mxu0 0
        %376 = vmatprep.subr.bf16.mxu0 0
        %377 = vmatpush1.bf16.msra.mxu0 0
        %378 = vmatprep.subr.bf16.mxu0 0
        %379 = vmatpush1.bf16.msra.mxu0 0
        %380 = vmatprep.subr.bf16.mxu0 0
        %381 = vmatpush1.bf16.msra.mxu0 0
        %382 = vmatprep.mubr.bf16.mxu0 0
        %383 = vmatmul.mubr.bf16.gmra.mrb[0].mxu0 %v344
        %v384 = vpop.f32.mrb[0].mxu0
        %v385 = vadd.f32 0.0, %v384
        %v386 = vpop.f32.mrb[0].mxu0
        %v387 = vpop.f32.mrb[0].mxu0
        %v388 = vpop.f32.mrb[0].mxu0
        %389 = vdwg.mxu0
        %v390 = vpack.c.bf16 %v385, %v385
        %vm391 = vcmask 60416
        %392 = vst.msk [vmem:[#allocation2] sm:$0xf] %vm391, %v390
        %393 = vrot.lane.b32.xlu0 %v278, 120
        %v394 = vpop.permute.xlu0 %393
        %395 = vrot.lane.b32.xlu0 %v278, 88
        %v396 = vpop.permute.xlu0 %395
        %v398 = vsel %vm282, %v394, 0
        %v401 = vsel %vm282, %v396, 0
        %403 = vmatprep.subr.bf16.mxu0 0
        %404 = vmatpush1.bf16.xpose.msra.mxu0 %v401
        %405 = vmatprep.subr.bf16.mxu0 0
        %406 = vmatpush1.bf16.xpose.msra.mxu0 0
        %407 = vmatprep.subr.bf16.mxu0 0
        %408 = vmatpush1.bf16.xpose.msra.mxu0 0
        %409 = vmatprep.subr.bf16.mxu0 0
        %410 = vmatpush1.bf16.xpose.msra.mxu0 0
        %411 = vmatprep.subr.bf16.mxu0 0
        %412 = vmatpush1.bf16.xpose.msra.mxu0 0
        %413 = vmatprep.subr.bf16.mxu0 0
        %414 = vmatpush1.bf16.xpose.msra.mxu0 0
        %415 = vmatprep.subr.bf16.mxu0 0
        %416 = vmatpush1.bf16.xpose.msra.mxu0 0
        %417 = vmatprep.subr.bf16.mxu0 0
        %418 = vmatpush1.bf16.xpose.msra.mxu0 0
        %419 = vmatprep.subr.bf16.mxu0 0
        %420 = vmatpush1.bf16.xpose.msra.mxu0 0
        %421 = vmatprep.subr.bf16.mxu0 0
        %422 = vmatpush1.bf16.xpose.msra.mxu0 0
        %423 = vmatprep.subr.bf16.mxu0 0
        %424 = vmatpush1.bf16.xpose.msra.mxu0 0
        %425 = vmatprep.subr.bf16.mxu0 0
        %426 = vmatpush1.bf16.xpose.msra.mxu0 0
        %427 = vmatprep.subr.bf16.mxu0 0
        %428 = vmatpush1.bf16.xpose.msra.mxu0 0
        %429 = vmatprep.subr.bf16.mxu0 0
        %430 = vmatpush1.bf16.xpose.msra.mxu0 0
        %431 = vmatprep.subr.bf16.mxu0 0
        %432 = vmatpush1.bf16.xpose.msra.mxu0 0
        %433 = vmatprep.subr.bf16.mxu0 0
        %434 = vmatpush1.bf16.xpose.msra.mxu0 0
        %435 = vmatprep.mubr.bf16.mxu0 0
        %436 = vmatmul.mubr.bf16.gmra.mrb[0].mxu0 %v398
        %v437 = vpop.f32.mrb[0].mxu0
        %v438 = vadd.f32 0.0, %v437
        %v439 = vpop.f32.mrb[0].mxu0
        %v440 = vpop.f32.mrb[0].mxu0
        %v441 = vpop.f32.mrb[0].mxu0
        %442 = vdwg.mxu0
        %v443 = vsel %vm282, %v438, -inf
        %444 = vmax.xlane.f32.xlu0 %v443
        %v445 = vpop.xlane.xlu0 %444
        %v446 = vsub.f32 %v438, %v445
        %v447 = vmul.f32 %v446, 1.442695
        %v448 = vpow.pop %v447
        %v449 = vsel %vm282, %v448, 0.0
        %450 = vadd.xlane.f32.xlu0 %v449
        %v451 = vpop.xlane.xlu0 %450
        %v452 = vrcp.pop %v451
        %v453 = vmul.f32 %v448, %v452
        %v454 = vpack.c.bf16 %v453, %v453
        %455 = vrot.lane.b32.xlu0 %v278, 56
        %v456 = vpop.permute.xlu0 %455
        %v458 = vsel %vm282, %v454, 0
        %v461 = vsel %vm346, %v456, 0
        %463 = vmatprep.subr.bf16.mxu0 0
        %464 = vmatpush1.bf16.msra.mxu0 %v461
        %465 = vmatprep.subr.bf16.mxu0 0
        %466 = vmatpush1.bf16.msra.mxu0 0
        %467 = vmatprep.subr.bf16.mxu0 0
        %468 = vmatpush1.bf16.msra.mxu0 0
        %469 = vmatprep.subr.bf16.mxu0 0
        %470 = vmatpush1.bf16.msra.mxu0 0
        %471 = vmatprep.subr.bf16.mxu0 0
        %472 = vmatpush1.bf16.msra.mxu0 0
        %473 = vmatprep.subr.bf16.mxu0 0
        %474 = vmatpush1.bf16.msra.mxu0 0
        %475 = vmatprep.subr.bf16.mxu0 0
        %476 = vmatpush1.bf16.msra.mxu0 0
        %477 = vmatprep.subr.bf16.mxu0 0
        %478 = vmatpush1.bf16.msra.mxu0 0
        %479 = vmatprep.subr.bf16.mxu0 0
        %480 = vmatpush1.bf16.msra.mxu0 0
        %481 = vmatprep.subr.bf16.mxu0 0
        %482 = vmatpush1.bf16.msra.mxu0 0
        %483 = vmatprep.subr.bf16.mxu0 0
        %484 = vmatpush1.bf16.msra.mxu0 0
        %485 = vmatprep.subr.bf16.mxu0 0
        %486 = vmatpush1.bf16.msra.mxu0 0
        %487 = vmatprep.subr.bf16.mxu0 0
        %488 = vmatpush1.bf16.msra.mxu0 0
        %489 = vmatprep.subr.bf16.mxu0 0
        %490 = vmatpush1.bf16.msra.mxu0 0
        %491 = vmatprep.subr.bf16.mxu0 0
        %492 = vmatpush1.bf16.msra.mxu0 0
        %493 = vmatprep.subr.bf16.mxu0 0
        %494 = vmatpush1.bf16.msra.mxu0 0
        %495 = vmatprep.mubr.bf16.mxu0 0
        %496 = vmatmul.mubr.bf16.gmra.mrb[0].mxu0 %v458
        %v497 = vpop.f32.mrb[0].mxu0
        %v498 = vadd.f32 0.0, %v497
        %v499 = vpop.f32.mrb[0].mxu0
        %v500 = vpop.f32.mrb[0].mxu0
        %v501 = vpop.f32.mrb[0].mxu0
        %502 = vdwg.mxu0
        %v503 = vpack.c.bf16 %v498, %v498
        %v505 = vunpack.c.l.b16 %v503
        %v506 = vpack.c.b16 %v505, %v505
        %507 = vrot.lane.b32.xlu0 %v506, 8
        %v508 = vpop.permute.xlu0 %507
        %vm510 = vcmask 126016
        %511 = vst.msk [vmem:[#allocation2] sm:$0xf] %vm510, %v508
        %512 = vrot.lane.b32.xlu0 %v278, 112
        %v513 = vpop.permute.xlu0 %512
        %514 = vrot.lane.b32.xlu0 %v278, 80
        %v515 = vpop.permute.xlu0 %514
        %v517 = vsel %vm282, %v513, 0
        %v520 = vsel %vm282, %v515, 0
        %522 = vmatprep.subr.bf16.mxu0 0
        %523 = vmatpush1.bf16.xpose.msra.mxu0 %v520
        %524 = vmatprep.subr.bf16.mxu0 0
        %525 = vmatpush1.bf16.xpose.msra.mxu0 0
        %526 = vmatprep.subr.bf16.mxu0 0
        %527 = vmatpush1.bf16.xpose.msra.mxu0 0
        %528 = vmatprep.subr.bf16.mxu0 0
        %529 = vmatpush1.bf16.xpose.msra.mxu0 0
        %530 = vmatprep.subr.bf16.mxu0 0
        %531 = vmatpush1.bf16.xpose.msra.mxu0 0
        %532 = vmatprep.subr.bf16.mxu0 0
        %533 = vmatpush1.bf16.xpose.msra.mxu0 0
        %534 = vmatprep.subr.bf16.mxu0 0
        %535 = vmatpush1.bf16.xpose.msra.mxu0 0
        %536 = vmatprep.subr.bf16.mxu0 0
        %537 = vmatpush1.bf16.xpose.msra.mxu0 0
        %538 = vmatprep.subr.bf16.mxu0 0
        %539 = vmatpush1.bf16.xpose.msra.mxu0 0
        %540 = vmatprep.subr.bf16.mxu0 0
        %541 = vmatpush1.bf16.xpose.msra.mxu0 0
        %542 = vmatprep.subr.bf16.mxu0 0
        %543 = vmatpush1.bf16.xpose.msra.mxu0 0
        %544 = vmatprep.subr.bf16.mxu0 0
        %545 = vmatpush1.bf16.xpose.msra.mxu0 0
        %546 = vmatprep.subr.bf16.mxu0 0
        %547 = vmatpush1.bf16.xpose.msra.mxu0 0
        %548 = vmatprep.subr.bf16.mxu0 0
        %549 = vmatpush1.bf16.xpose.msra.mxu0 0
        %550 = vmatprep.subr.bf16.mxu0 0
        %551 = vmatpush1.bf16.xpose.msra.mxu0 0
        %552 = vmatprep.subr.bf16.mxu0 0
        %553 = vmatpush1.bf16.xpose.msra.mxu0 0
        %554 = vmatprep.mubr.bf16.mxu0 0
        %555 = vmatmul.mubr.bf16.gmra.mrb[0].mxu0 %v517
        %v556 = vpop.f32.mrb[0].mxu0
        %v557 = vadd.f32 0.0, %v556
        %v558 = vpop.f32.mrb[0].mxu0
        %v559 = vpop.f32.mrb[0].mxu0
        %v560 = vpop.f32.mrb[0].mxu0
        %561 = vdwg.mxu0
        %v562 = vsel %vm282, %v557, -inf
        %563 = vmax.xlane.f32.xlu0 %v562
        %v564 = vpop.xlane.xlu0 %563
        %v565 = vsub.f32 %v557, %v564
        %v566 = vmul.f32 %v565, 1.442695
        %v567 = vpow.pop %v566
        %v568 = vsel %vm282, %v567, 0.0
        %569 = vadd.xlane.f32.xlu0 %v568
        %v570 = vpop.xlane.xlu0 %569
        %v571 = vrcp.pop %v570
        %v572 = vmul.f32 %v567, %v571
        %v573 = vpack.c.bf16 %v572, %v572
        %574 = vrot.lane.b32.xlu0 %v278, 48
        %v575 = vpop.permute.xlu0 %574
        %v577 = vsel %vm282, %v573, 0
        %v580 = vsel %vm346, %v575, 0
        %582 = vmatprep.subr.bf16.mxu0 0
        %583 = vmatpush1.bf16.msra.mxu0 %v580
        %584 = vmatprep.subr.bf16.mxu0 0
        %585 = vmatpush1.bf16.msra.mxu0 0
        %586 = vmatprep.subr.bf16.mxu0 0
        %587 = vmatpush1.bf16.msra.mxu0 0
        %588 = vmatprep.subr.bf16.mxu0 0
        %589 = vmatpush1.bf16.msra.mxu0 0
        %590 = vmatprep.subr.bf16.mxu0 0
        %591 = vmatpush1.bf16.msra.mxu0 0
        %592 = vmatprep.subr.bf16.mxu0 0
        %593 = vmatpush1.bf16.msra.mxu0 0
        %594 = vmatprep.subr.bf16.mxu0 0
        %595 = vmatpush1.bf16.msra.mxu0 0
        %596 = vmatprep.subr.bf16.mxu0 0
        %597 = vmatpush1.bf16.msra.mxu0 0
        %598 = vmatprep.subr.bf16.mxu0 0
        %599 = vmatpush1.bf16.msra.mxu0 0
        %600 = vmatprep.subr.bf16.mxu0 0
        %601 = vmatpush1.bf16.msra.mxu0 0
        %602 = vmatprep.subr.bf16.mxu0 0
        %603 = vmatpush1.bf16.msra.mxu0 0
        %604 = vmatprep.subr.bf16.mxu0 0
        %605 = vmatpush1.bf16.msra.mxu0 0
        %606 = vmatprep.subr.bf16.mxu0 0
        %607 = vmatpush1.bf16.msra.mxu0 0
        %608 = vmatprep.subr.bf16.mxu0 0
        %609 = vmatpush1.bf16.msra.mxu0 0
        %610 = vmatprep.subr.bf16.mxu0 0
        %611 = vmatpush1.bf16.msra.mxu0 0
        %612 = vmatprep.subr.bf16.mxu0 0
        %613 = vmatpush1.bf16.msra.mxu0 0
        %614 = vmatprep.mubr.bf16.mxu0 0
        %615 = vmatmul.mubr.bf16.gmra.mrb[0].mxu0 %v577
        %v616 = vpop.f32.mrb[0].mxu0
        %v617 = vadd.f32 0.0, %v616
        %v618 = vpop.f32.mrb[0].mxu0
        %v619 = vpop.f32.mrb[0].mxu0
        %v620 = vpop.f32.mrb[0].mxu0
        %621 = vdwg.mxu0
        %v622 = vpack.c.bf16 %v617, %v617
        %v624 = vunpack.c.l.b16 %v622
        %v625 = vpack.c.b16 %v624, %v624
        %626 = vrot.lane.b32.xlu0 %v625, 16
        %v627 = vpop.permute.xlu0 %626
        %vm629 = vcmask 191616
        %630 = vst.msk [vmem:[#allocation2] sm:$0xf] %vm629, %v627
        %631 = vrot.lane.b32.xlu0 %v278, 104
        %v632 = vpop.permute.xlu0 %631
        %633 = vrot.lane.b32.xlu0 %v278, 72
        %v634 = vpop.permute.xlu0 %633
        %v636 = vsel %vm282, %v632, 0
        %v639 = vsel %vm282, %v634, 0
        %641 = vmatprep.subr.bf16.mxu0 0
        %642 = vmatpush1.bf16.xpose.msra.mxu0 %v639
        %643 = vmatprep.subr.bf16.mxu0 0
        %644 = vmatpush1.bf16.xpose.msra.mxu0 0
        %645 = vmatprep.subr.bf16.mxu0 0
        %646 = vmatpush1.bf16.xpose.msra.mxu0 0
        %647 = vmatprep.subr.bf16.mxu0 0
        %648 = vmatpush1.bf16.xpose.msra.mxu0 0
        %649 = vmatprep.subr.bf16.mxu0 0
        %650 = vmatpush1.bf16.xpose.msra.mxu0 0
        %651 = vmatprep.subr.bf16.mxu0 0
        %652 = vmatpush1.bf16.xpose.msra.mxu0 0
        %653 = vmatprep.subr.bf16.mxu0 0
        %654 = vmatpush1.bf16.xpose.msra.mxu0 0
        %655 = vmatprep.subr.bf16.mxu0 0
        %656 = vmatpush1.bf16.xpose.msra.mxu0 0
        %657 = vmatprep.subr.bf16.mxu0 0
        %658 = vmatpush1.bf16.xpose.msra.mxu0 0
        %659 = vmatprep.subr.bf16.mxu0 0
        %660 = vmatpush1.bf16.xpose.msra.mxu0 0
        %661 = vmatprep.subr.bf16.mxu0 0
        %662 = vmatpush1.bf16.xpose.msra.mxu0 0
        %663 = vmatprep.subr.bf16.mxu0 0
        %664 = vmatpush1.bf16.xpose.msra.mxu0 0
        %665 = vmatprep.subr.bf16.mxu0 0
        %666 = vmatpush1.bf16.xpose.msra.mxu0 0
        %667 = vmatprep.subr.bf16.mxu0 0
        %668 = vmatpush1.bf16.xpose.msra.mxu0 0
        %669 = vmatprep.subr.bf16.mxu0 0
        %670 = vmatpush1.bf16.xpose.msra.mxu0 0
        %671 = vmatprep.subr.bf16.mxu0 0
        %672 = vmatpush1.bf16.xpose.msra.mxu0 0
        %673 = vmatprep.mubr.bf16.mxu0 0
        %674 = vmatmul.mubr.bf16.gmra.mrb[0].mxu0 %v636
        %v675 = vpop.f32.mrb[0].mxu0
        %v676 = vadd.f32 0.0, %v675
        %v677 = vpop.f32.mrb[0].mxu0
        %v678 = vpop.f32.mrb[0].mxu0
        %v679 = vpop.f32.mrb[0].mxu0
        %680 = vdwg.mxu0
        %v681 = vsel %vm282, %v676, -inf
        %682 = vmax.xlane.f32.xlu0 %v681
        %v683 = vpop.xlane.xlu0 %682
        %v684 = vsub.f32 %v676, %v683
        %v685 = vmul.f32 %v684, 1.442695
        %v686 = vpow.pop %v685
        %v687 = vsel %vm282, %v686, 0.0
        %688 = vadd.xlane.f32.xlu0 %v687
        %v689 = vpop.xlane.xlu0 %688
        %v690 = vrcp.pop %v689
        %v691 = vmul.f32 %v686, %v690
        %v692 = vpack.c.bf16 %v691, %v691
        %693 = vrot.lane.b32.xlu0 %v278, 40
        %v694 = vpop.permute.xlu0 %693
        %v696 = vsel %vm282, %v692, 0
        %v699 = vsel %vm346, %v694, 0
        %701 = vmatprep.subr.bf16.mxu0 0
        %702 = vmatpush1.bf16.msra.mxu0 %v699
        %703 = vmatprep.subr.bf16.mxu0 0
        %704 = vmatpush1.bf16.msra.mxu0 0
        %705 = vmatprep.subr.bf16.mxu0 0
        %706 = vmatpush1.bf16.msra.mxu0 0
        %707 = vmatprep.subr.bf16.mxu0 0
        %708 = vmatpush1.bf16.msra.mxu0 0
        %709 = vmatprep.subr.bf16.mxu0 0
        %710 = vmatpush1.bf16.msra.mxu0 0
        %711 = vmatprep.subr.bf16.mxu0 0
        %712 = vmatpush1.bf16.msra.mxu0 0
        %713 = vmatprep.subr.bf16.mxu0 0
        %714 = vmatpush1.bf16.msra.mxu0 0
        %715 = vmatprep.subr.bf16.mxu0 0
        %716 = vmatpush1.bf16.msra.mxu0 0
        %717 = vmatprep.subr.bf16.mxu0 0
        %718 = vmatpush1.bf16.msra.mxu0 0
        %719 = vmatprep.subr.bf16.mxu0 0
        %720 = vmatpush1.bf16.msra.mxu0 0
        %721 = vmatprep.subr.bf16.mxu0 0
        %722 = vmatpush1.bf16.msra.mxu0 0
        %723 = vmatprep.subr.bf16.mxu0 0
        %724 = vmatpush1.bf16.msra.mxu0 0
        %725 = vmatprep.subr.bf16.mxu0 0
        %726 = vmatpush1.bf16.msra.mxu0 0
        %727 = vmatprep.subr.bf16.mxu0 0
        %728 = vmatpush1.bf16.msra.mxu0 0
        %729 = vmatprep.subr.bf16.mxu0 0
        %730 = vmatpush1.bf16.msra.mxu0 0
        %731 = vmatprep.subr.bf16.mxu0 0
        %732 = vmatpush1.bf16.msra.mxu0 0
        %733 = vmatprep.mubr.bf16.mxu0 0
        %734 = vmatmul.mubr.bf16.gmra.mrb[0].mxu0 %v696
        %v735 = vpop.f32.mrb[0].mxu0
        %v736 = vadd.f32 0.0, %v735
        %v737 = vpop.f32.mrb[0].mxu0
        %v738 = vpop.f32.mrb[0].mxu0
        %v739 = vpop.f32.mrb[0].mxu0
        %740 = vdwg.mxu0
        %v741 = vpack.c.bf16 %v736, %v736
        %v743 = vunpack.c.l.b16 %v741
        %v744 = vpack.c.b16 %v743, %v743
        %745 = vrot.lane.b32.xlu0 %v744, 24
        %v746 = vpop.permute.xlu0 %745
        %vm748 = vcmask 257216
        %749 = vst.msk [vmem:[#allocation2] sm:$0xf] %vm748, %v746
        %v750 = vld [vmem:[#allocation2] sm:$0xf]
        %v751 = vld [vmem:[#allocation8] sm:$0xf]
        %v752 = vld [vmem:[#allocation8 + $0x4] sm:$0xf]
        %v753 = vld [vmem:[#allocation8 + $0x8] sm:$0xf]
        %v754 = vld [vmem:[#allocation8 + $0xc] sm:$0xf]
        %v759 = vunpack.c.l.b16 %v751
        %v760 = vunpack.c.l.b16 %v752
        %v761 = vunpack.c.l.b16 %v753
        %v762 = vunpack.c.l.b16 %v754
        %v763 = vpack.c.b16 %v760, %v759
        %v764 = vpack.c.b16 %v762, %v761
        %v768 = vsel %vm234, %v750, 0
        %770 = vmatprep.subr.bf16.mxu0 0
        %771 = vmatpush1.bf16.msra.mxu0 %v763
        %772 = vmatprep.subr.bf16.mxu0 0
        %773 = vmatpush1.bf16.msra.mxu0 %v764
        %774 = vmatprep.subr.bf16.mxu0 0
        %775 = vmatpush1.bf16.msra.mxu0 0
        %776 = vmatprep.subr.bf16.mxu0 0
        %777 = vmatpush1.bf16.msra.mxu0 0
        %778 = vmatprep.subr.bf16.mxu0 0
        %779 = vmatpush1.bf16.msra.mxu0 0
        %780 = vmatprep.subr.bf16.mxu0 0
        %781 = vmatpush1.bf16.msra.mxu0 0
        %782 = vmatprep.subr.bf16.mxu0 0
        %783 = vmatpush1.bf16.msra.mxu0 0
        %784 = vmatprep.subr.bf16.mxu0 0
        %785 = vmatpush1.bf16.msra.mxu0 0
        %786 = vmatprep.subr.bf16.mxu0 0
        %787 = vmatpush1.bf16.msra.mxu0 0
        %788 = vmatprep.subr.bf16.mxu0 0
        %789 = vmatpush1.bf16.msra.mxu0 0
        %790 = vmatprep.subr.bf16.mxu0 0
        %791 = vmatpush1.bf16.msra.mxu0 0
        %792 = vmatprep.subr.bf16.mxu0 0
        %793 = vmatpush1.bf16.msra.mxu0 0
        %794 = vmatprep.subr.bf16.mxu0 0
        %795 = vmatpush1.bf16.msra.mxu0 0
        %796 = vmatprep.subr.bf16.mxu0 0
        %797 = vmatpush1.bf16.msra.mxu0 0
        %798 = vmatprep.subr.bf16.mxu0 0
        %799 = vmatpush1.bf16.msra.mxu0 0
        %800 = vmatprep.subr.bf16.mxu0 0
        %801 = vmatpush1.bf16.msra.mxu0 0
        %802 = vmatprep.mubr.bf16.mxu0 0
        %803 = vmatmul.mubr.bf16.gmra.mrb[0].mxu0 %v768
        %v804 = vpop.f32.mrb[0].mxu0
        %v805 = vadd.f32 0.0, %v804
        %v806 = vpop.f32.mrb[0].mxu0
        %v807 = vpop.f32.mrb[0].mxu0
        %v808 = vpop.f32.mrb[0].mxu0
        %809 = vdwg.mxu0
        %810 = vst.msk [vmem:[%s214] sm:$0xff] %vm234, %v805
        %s811 = sand.u32 %s97, 1
        %s812 = scalar_lea.sflag [#allocation5], %s811
        %s813 = sand.u32 %s97, 1
        %s814 = smul.addr %s813, 8
        %s815 = scalar_lea.vmem [#allocation9], %s814
        // Predicated region
        $region45: #{tpu_custom_call.1} parent=31 // pred_check
          %p816 = pneg %p107
        $region46: #{tpu_custom_call.1} parent=31 // pred_check_branch
          %818 = sbr.rel (%p816) target = $region48
        $region47: #{tpu_custom_call.1} parent=31 // pred_region
          %s820 = ssub.s32 128, 128
          %821 = vsyncadd %s812, %s820
          %s822 = smul.addr %s21, 128
          %s823 = scalar_lea.hbm %s3, %s822
          %s825 = sshll.u32 %s815, 4
          %s826 = int_to_ptr.vmem [resolvable:$true] %s825
          %828 = dma.vmem_to_hbm [thread:$0]  %s826, 128, %s823, %s812
        $region48: #{tpu_custom_call.1} parent=31 // pred_fallthru
          _
      $region32: #{tpu_custom_call.1} parent=5 // pred_fallthru
        _
      %p829 = scmp.le.s32.totalorder 2, %s16
      // Predicated region
      $region49: #{tpu_custom_call.1} parent=5 // pred_check
        %p830 = pneg %p829
      $region50: #{tpu_custom_call.1} parent=5 // pred_check_branch
        %832 = sbr.rel (%p830) target = $region52
      $region51: #{tpu_custom_call.1} parent=5 // pred_region
        %s833 = ssub.s32 %s16, 2
        // Predicated region
        $region53: #{tpu_custom_call.1} parent=51 // pred_check
          %p834 = pneg %p113
        $region54: #{tpu_custom_call.1} parent=51 // pred_check_branch
          %836 = sbr.rel (%p834) target = $region56
        $region55: #{tpu_custom_call.1} parent=51 // pred_region
          %s837 = sand.u32 %s98, 1
          %s838 = scalar_lea.sflag [#allocation5], %s837
          %s839 = sand.u32 %s98, 1
          %s840 = smul.addr %s839, 8
          %s841 = scalar_lea.vmem [#allocation9], %s840
          %842 = dma.done %s838, 128
        $region56: #{tpu_custom_call.1} parent=51 // pred_fallthru
          _
      $region52: #{tpu_custom_call.1} parent=5 // pred_fallthru
        _
    $region6: #{tpu_custom_call.1} parent=1 // loop_footer
      %s20 = sadd.s32 1, %s16
    $region7: #{tpu_custom_call.1} parent=1 // loop_footer_branch
      %15 = sbr.rel target = $region3
    $region8: #{tpu_custom_call.1} parent=1 // loop_exit
      _
    %843 = vsyncpa [#allocation4], 1
    %s844 = scalar_lea.sflag [#allocation4], 1
    %845 = vsyncpa %s844, 1
    %846 = vsyncpa [#allocation7], 1
    %847 = vsyncpa [#allocation5], 1
    %s848 = scalar_lea.sflag [#allocation5], 1
    %849 = vsyncpa %s848, 1

</llo_original>
